<compile_context>
chip_gen: v7x
topology: tpu7x:2x2x1
jax: 0.10.0
libtpu: 0.0.40
codegen_flags: <defaults>
</compile_context>

<pallas_src>
import functools

import jax
import jax.numpy as jnp
from jax.experimental import pallas as pl
from jax.experimental.pallas import tpu as pltpu

IGNORE_INDEX = -100
LANES = 128
SUBLANES = 8
# (2048, 128) f32 + i32 blocks -> 2 MiB/step, 4 MiB double-buffered: fits the
# default scoped-VMEM budget on v5e/v6e/v7x with plenty of headroom.
DEFAULT_BLOCK_ROWS = 2048


def _mse_kernel(w_ref, x_ref, t_ref, sum_ref, cnt_ref, *,
                num_classes, ignore_index, rows, block_rows, steps_per_split):
    """Masked, class-weighted MSE partial reduction.

    w_ref  : (num_classes,) f32 in SMEM    -- per-class weights
    x_ref  : (block_rows, 128) f32 in VMEM -- prediction block
    t_ref  : (block_rows, 128) i32 in VMEM -- integer targets
    sum_ref: (8, 128) f32 VMEM output      -- per-split weighted-sum vector
    cnt_ref: (8, 128) f32 VMEM output      -- per-split valid-count vector
    """
    s = pl.program_id(0)   # parallel split (megacore on v7x)
    i = pl.program_id(1)   # reduction step within the split

    @pl.when(i == 0)
    def _():
        sum_ref[...] = jnp.zeros_like(sum_ref)
        cnt_ref[...] = jnp.zeros_like(cnt_ref)

    x = x_ref[...]                       # (block_rows, 128) f32
    t = t_ref[...]                       # (block_rows, 128) i32

    # Tail mask: rows at/after `remaining` lie outside the real array (the
    # final partial block, or a fully over-run block that the index_map
    # clamped in-bounds).  Mask with the *logical* block position.
    logical_block = s * steps_per_split + i
    remaining = rows - logical_block * block_rows            # scalar (sreg)
    row_ids = jax.lax.broadcasted_iota(jnp.int32, x.shape, 0)
    inbound = row_ids < remaining

    # weights.gather(0, target) as a cascaded select (2 VPU ops / class).
    # `at` stays 0 for ignore_index (and anything else unmatched), so no
    # separate validity select is needed for the weighted term.
    at = jnp.zeros_like(x)
    for c in range(num_classes):
        at = jnp.where(t == c, w_ref[c], at)

    diff = t.astype(jnp.float32) - x
    # jnp.where (select) also kills any garbage/NaN read from the padded
    # out-of-bounds part of a partial block.
    weighted = jnp.where(inbound, at * (diff * diff), 0.0)
    cnt = jnp.where(jnp.logical_and(t != ignore_index, inbound), 1.0, 0.0)

    # TODO(synk): torch code prints loss[230:240] of the dynamically-filtered
    # per-element loss (debug only, no effect on the result); skipped because
    # the boolean-mask filter produces a dynamic shape.

    # Fold (block_rows, 128) -> (8, 128) with pure VPU adds and accumulate
    # into the VMEM-resident output block.  The cross-lane reduction to a
    # scalar happens exactly once, outside the kernel.
    g = block_rows // SUBLANES
    sum_ref[...] += weighted.reshape(g, SUBLANES, LANES).sum(axis=0)
    cnt_ref[...] += cnt.reshape(g, SUBLANES, LANES).sum(axis=0)


def mse_loss(weights, inputs, target, ignore_index=IGNORE_INDEX,
             block_rows=DEFAULT_BLOCK_ROWS):
    x = inputs
    if x.ndim > 2:
        # torch: input.transpose(1, 2).contiguous().view(-1, C)
        x = jnp.transpose(x, (0, 2, 1)).reshape(-1, inputs.shape[1])
    # The (target - input) broadcast in the reference module is only sane for
    # a single channel, which the final .squeeze() removes.
    x = x.reshape(-1).astype(jnp.float32)
    t = target.reshape(-1).astype(jnp.int32)
    m = x.shape[0]

    # Re-tile the flat stream to a lane-dense (rows, 128) slab.  When m is a
    # multiple of 8*128 this is a free reshape (no extra HBM traffic, unlike
    # the old full-size .at[:m].set padding copy); otherwise only the final
    # fragment (< 1024 elements) is padded.  Padded predictions are 0 and
    # padded targets are ignore_index, so they contribute nothing.
    tile = SUBLANES * LANES
    m_pad = ((m + tile - 1) // tile) * tile
    if m_pad != m:
        pad = m_pad - m
        x = jnp.pad(x, (0, pad))
        t = jnp.pad(t, (0, pad), constant_values=ignore_index)
    rows = m_pad // LANES
    x2 = x.reshape(rows, LANES)
    t2 = t.reshape(rows, LANES)

    block_rows = max(SUBLANES, (block_rows // SUBLANES) * SUBLANES)
    block_rows = min(block_rows, rows)
    nblocks = (rows + block_rows - 1) // block_rows
    # Two-way split of the reduction: the leading "parallel" axis lets the
    # two TensorCores of a v7x chip each own half of the stream; on 1-TC
    # chips it just runs sequentially.
    nsplit = 2 if nblocks >= 2 else 1
    sps = (nblocks + nsplit - 1) // nsplit

    num_classes = int(weights.shape[0])
    kernel = functools.partial(
        _mse_kernel, num_classes=num_classes, ignore_index=ignore_index,
        rows=rows, block_rows=block_rows, steps_per_split=sps)

    def data_map(s, i):
        # Clamp so the DMA stays in-bounds; over-run blocks are fully masked
        # inside the kernel via the logical (unclamped) position.
        return (jnp.minimum(s * sps + i, nblocks - 1), 0)

    sums, cnts = pl.pallas_call(
        kernel,
        out_shape=(jax.ShapeDtypeStruct((nsplit, SUBLANES, LANES), jnp.float32),
                   jax.ShapeDtypeStruct((nsplit, SUBLANES, LANES), jnp.float32)),
        grid=(nsplit, sps),
        in_specs=[
            pl.BlockSpec(memory_space=pltpu.MemorySpace.SMEM),     # class weights
            pl.BlockSpec((block_rows, LANES), data_map),           # predictions
            pl.BlockSpec((block_rows, LANES), data_map),           # targets
        ],
        out_specs=(
            pl.BlockSpec((None, SUBLANES, LANES), lambda s, i: (s, 0, 0)),
            pl.BlockSpec((None, SUBLANES, LANES), lambda s, i: (s, 0, 0)),
        ),
        compiler_params=pltpu.CompilerParams(
            dimension_semantics=("parallel", "arbitrary")),
    )(weights.astype(jnp.float32), x2, t2)

    # Final tiny cross-lane reduction + mean in XLA.
    # NOTE: if every target == ignore_index the valid count is 0 and this
    # yields NaN, matching torch's mean over an empty selection.
    return jnp.sum(sums) / jnp.sum(cnts)


def _ref_loss(w, xin, tin, ignore_index=IGNORE_INDEX):
    """Pure-JAX reference with the same semantics as the torch module."""
    xf = jnp.transpose(xin, (0, 2, 1)).reshape(-1, xin.shape[1]).reshape(-1)
    tf = tin.reshape(-1)
    mask = tf != ignore_index
    at = w[jnp.clip(tf, 0, w.shape[0] - 1)]
    per = (tf.astype(jnp.float32) - xf.astype(jnp.float32)) ** 2
    return (jnp.sum(jnp.where(mask, at * per, 0.0))
            / jnp.sum(mask.astype(jnp.float32)))


if __name__ == "__main__":
    key = jax.random.PRNGKey(0)
    k1, k2, k3 = jax.random.split(key, 3)

    N, C, L = 2, 1, 128          # input is (N, C=1, L), target is (N, L)
    NUM_CLASSES = 8

    x = jax.random.normal(k1, (N, C, L), dtype=jnp.float32)
    t = jax.random.randint(k2, (N, L), 0, NUM_CLASSES).astype(jnp.int32)
    drop = jax.random.bernoulli(k3, 0.2, (N, L))
    t = jnp.where(drop, IGNORE_INDEX, t)          # some positions ignored

    # Deterministic per-class weights (the module's `self.weights`).
    weights = 0.5 + 0.1 * jnp.arange(NUM_CLASSES, dtype=jnp.float32)

    loss = jax.block_until_ready(mse_loss(weights, x, t))
    ref = _ref_loss(weights, x, t)
    assert jnp.allclose(loss, ref, rtol=1e-5, atol=1e-5), (loss, ref)

    # Second case: non-128-multiple length, multiple grid blocks, 2-way split
    # and a clamped over-run block (block_rows shrunk so the grid has >1 step).
    k4, k5, k6 = jax.random.split(k3, 3)
    N2, L2 = 2, 1283
    x_b = jax.random.normal(k4, (N2, 1, L2), dtype=jnp.float32)
    t_b = jax.random.randint(k5, (N2, L2), 0, NUM_CLASSES).astype(jnp.int32)
    t_b = jnp.where(jax.random.bernoulli(k6, 0.3, (N2, L2)), IGNORE_INDEX, t_b)
    loss2 = jax.block_until_ready(mse_loss(weights, x_b, t_b, block_rows=8))
    ref2 = _ref_loss(weights, x_b, t_b)
    assert jnp.allclose(loss2, ref2, rtol=1e-5, atol=1e-5), (loss2, ref2)

    print("KERNEL_OK")
</pallas_src>

<mosaic_0001>
module attributes {stable_mosaic.version = 11 : i64} {
  func.func @_mse_kernel(%arg0: i32, %arg1: i32, %arg2: memref<8xf32, #tpu.memory_space<smem>>, %arg3: memref<8x128xf32, #tpu.memory_space<vmem>>, %arg4: memref<8x128xi32, #tpu.memory_space<vmem>>, %arg5: memref<1x8x128xf32, #tpu.memory_space<vmem>>, %arg6: memref<1x8x128xf32, #tpu.memory_space<vmem>>) attributes {dimension_semantics = [#tpu.dimension_semantics<parallel>, #tpu.dimension_semantics<arbitrary>], iteration_bounds = array<i64: 1, 1>, scalar_prefetch = 0 : i64, scratch_operands = 0 : i64, tpu.core_type = #tpu.core_type<tc>, window_params = [{transform_indices = @transform_0, window_bounds = array<i64: 8>}, {transform_indices = @transform_1, window_bounds = array<i64: 8, 128>}, {transform_indices = @transform_2, window_bounds = array<i64: 8, 128>}, {transform_indices = @transform_3, window_bounds = array<i64: 1, 8, 128>}, {transform_indices = @transform_4, window_bounds = array<i64: 1, 8, 128>}]} {
    %c0_i32 = arith.constant 0 : i32
    %0 = arith.cmpi eq, %arg1, %c0_i32 : i32
    %1 = arith.extui %0 : i1 to i32
    %c0_i32_0 = arith.constant 0 : i32
    %2 = arith.cmpi ne, %1, %c0_i32_0 : i32
    scf.if %2 {
      %cst_25 = arith.constant 0.000000e+00 : f32
      %81 = vector.broadcast %cst_25 : f32 to vector<8x128xf32>
      %c0_26 = arith.constant 0 : index
      %c0_27 = arith.constant 0 : index
      %c0_28 = arith.constant 0 : index
      %82 = vector.load %arg5[%c0_26, %c0_27, %c0_28] : memref<1x8x128xf32, #tpu.memory_space<vmem>>, vector<1x8x128xf32>
      %83 = vector.shape_cast %82 : vector<1x8x128xf32> to vector<8x128xf32>
      %84 = vector.shape_cast %81 : vector<8x128xf32> to vector<1x8x128xf32>
      tpu.vector_store %arg5[%c0_26, %c0_27, %c0_28], %84 {strides = array<i32>} : memref<1x8x128xf32, #tpu.memory_space<vmem>>, vector<1x8x128xf32>,
      %cst_29 = arith.constant 0.000000e+00 : f32
      %85 = vector.broadcast %cst_29 : f32 to vector<8x128xf32>
      %c0_30 = arith.constant 0 : index
      %c0_31 = arith.constant 0 : index
      %c0_32 = arith.constant 0 : index
      %86 = vector.load %arg6[%c0_30, %c0_31, %c0_32] : memref<1x8x128xf32, #tpu.memory_space<vmem>>, vector<1x8x128xf32>
      %87 = vector.shape_cast %86 : vector<1x8x128xf32> to vector<8x128xf32>
      %88 = vector.shape_cast %85 : vector<8x128xf32> to vector<1x8x128xf32>
      tpu.vector_store %arg6[%c0_30, %c0_31, %c0_32], %88 {strides = array<i32>} : memref<1x8x128xf32, #tpu.memory_space<vmem>>, vector<1x8x128xf32>,
    } else {
    }
    %c0 = arith.constant 0 : index
    %c0_1 = arith.constant 0 : index
    %3 = vector.load %arg3[%c0, %c0_1] : memref<8x128xf32, #tpu.memory_space<vmem>>, vector<8x128xf32>
    %c0_2 = arith.constant 0 : index
    %c0_3 = arith.constant 0 : index
    %4 = vector.load %arg4[%c0_2, %c0_3] : memref<8x128xi32, #tpu.memory_space<vmem>>, vector<8x128xi32>
    %c1_i32 = arith.constant 1 : i32
    %5 = arith.muli %arg0, %c1_i32 : i32
    %6 = arith.addi %5, %arg1 : i32
    %c8_i32 = arith.constant 8 : i32
    %7 = arith.muli %6, %c8_i32 : i32
    %c8_i32_4 = arith.constant 8 : i32
    %8 = arith.subi %c8_i32_4, %7 : i32
    %9 = tpu.iota {dimensions = array<i32: 0>} : vector<8x128xi32>
    %10 = vector.broadcast %8 : i32 to vector<8x128xi32>
    %11 = arith.cmpi slt, %9, %10 : vector<8x128xi32>
    %cst = arith.constant 0.000000e+00 : f32
    %12 = vector.broadcast %cst : f32 to vector<8x128xf32>
    %c0_i32_5 = arith.constant 0 : i32
    %13 = vector.broadcast %c0_i32_5 : i32 to vector<8x128xi32>
    %14 = arith.cmpi eq, %4, %13 : vector<8x128xi32>
    %c0_6 = arith.constant 0 : index
    %15 = memref.load %arg2[%c0_6] : memref<8xf32, #tpu.memory_space<smem>>
    %16 = vector.broadcast %15 : f32 to vector<8x128xf32>
    %17 = arith.select %14, %16, %12 : vector<8x128xi1>, vector<8x128xf32>
    %c1_i32_7 = arith.constant 1 : i32
    %18 = vector.broadcast %c1_i32_7 : i32 to vector<8x128xi32>
    %19 = arith.cmpi eq, %4, %18 : vector<8x128xi32>
    %c1 = arith.constant 1 : index
    %20 = memref.load %arg2[%c1] : memref<8xf32, #tpu.memory_space<smem>>
    %21 = vector.broadcast %20 : f32 to vector<8x128xf32>
    %22 = arith.select %19, %21, %17 : vector<8x128xi1>, vector<8x128xf32>
    %c2_i32 = arith.constant 2 : i32
    %23 = vector.broadcast %c2_i32 : i32 to vector<8x128xi32>
    %24 = arith.cmpi eq, %4, %23 : vector<8x128xi32>
    %c2 = arith.constant 2 : index
    %25 = memref.load %arg2[%c2] : memref<8xf32, #tpu.memory_space<smem>>
    %26 = vector.broadcast %25 : f32 to vector<8x128xf32>
    %27 = arith.select %24, %26, %22 : vector<8x128xi1>, vector<8x128xf32>
    %c3_i32 = arith.constant 3 : i32
    %28 = vector.broadcast %c3_i32 : i32 to vector<8x128xi32>
    %29 = arith.cmpi eq, %4, %28 : vector<8x128xi32>
    %c3 = arith.constant 3 : index
    %30 = memref.load %arg2[%c3] : memref<8xf32, #tpu.memory_space<smem>>
    %31 = vector.broadcast %30 : f32 to vector<8x128xf32>
    %32 = arith.select %29, %31, %27 : vector<8x128xi1>, vector<8x128xf32>
    %c4_i32 = arith.constant 4 : i32
    %33 = vector.broadcast %c4_i32 : i32 to vector<8x128xi32>
    %34 = arith.cmpi eq, %4, %33 : vector<8x128xi32>
    %c4 = arith.constant 4 : index
    %35 = memref.load %arg2[%c4] : memref<8xf32, #tpu.memory_space<smem>>
    %36 = vector.broadcast %35 : f32 to vector<8x128xf32>
    %37 = arith.select %34, %36, %32 : vector<8x128xi1>, vector<8x128xf32>
    %c5_i32 = arith.constant 5 : i32
    %38 = vector.broadcast %c5_i32 : i32 to vector<8x128xi32>
    %39 = arith.cmpi eq, %4, %38 : vector<8x128xi32>
    %c5 = arith.constant 5 : index
    %40 = memref.load %arg2[%c5] : memref<8xf32, #tpu.memory_space<smem>>
    %41 = vector.broadcast %40 : f32 to vector<8x128xf32>
    %42 = arith.select %39, %41, %37 : vector<8x128xi1>, vector<8x128xf32>
    %c6_i32 = arith.constant 6 : i32
    %43 = vector.broadcast %c6_i32 : i32 to vector<8x128xi32>
    %44 = arith.cmpi eq, %4, %43 : vector<8x128xi32>
    %c6 = arith.constant 6 : index
    %45 = memref.load %arg2[%c6] : memref<8xf32, #tpu.memory_space<smem>>
    %46 = vector.broadcast %45 : f32 to vector<8x128xf32>
    %47 = arith.select %44, %46, %42 : vector<8x128xi1>, vector<8x128xf32>
    %c7_i32 = arith.constant 7 : i32
    %48 = vector.broadcast %c7_i32 : i32 to vector<8x128xi32>
    %49 = arith.cmpi eq, %4, %48 : vector<8x128xi32>
    %c7 = arith.constant 7 : index
    %50 = memref.load %arg2[%c7] : memref<8xf32, #tpu.memory_space<smem>>
    %51 = vector.broadcast %50 : f32 to vector<8x128xf32>
    %52 = arith.select %49, %51, %47 : vector<8x128xi1>, vector<8x128xf32>
    %53 = arith.sitofp %4 : vector<8x128xi32> to vector<8x128xf32>
    %54 = arith.subf %53, %3 : vector<8x128xf32>
    %55 = arith.mulf %54, %54 : vector<8x128xf32>
    %56 = arith.mulf %52, %55 : vector<8x128xf32>
    %cst_8 = arith.constant 0.000000e+00 : f32
    %57 = vector.broadcast %cst_8 : f32 to vector<8x128xf32>
    %58 = arith.select %11, %56, %57 : vector<8x128xi1>, vector<8x128xf32>
    %c-100_i32 = arith.constant -100 : i32
    %59 = vector.broadcast %c-100_i32 : i32 to vector<8x128xi32>
    %60 = arith.cmpi ne, %4, %59 : vector<8x128xi32>
    %61 = arith.andi %60, %11 : vector<8x128xi1>
    %cst_9 = arith.constant 1.000000e+00 : f32
    %cst_10 = arith.constant 0.000000e+00 : f32
    %62 = vector.broadcast %cst_9 : f32 to vector<8x128xf32>
    %63 = vector.broadcast %cst_10 : f32 to vector<8x128xf32>
    %64 = arith.select %61, %62, %63 : vector<8x128xi1>, vector<8x128xf32>
    %c0_11 = arith.constant 0 : index
    %c0_12 = arith.constant 0 : index
    %c0_13 = arith.constant 0 : index
    %65 = vector.load %arg5[%c0_11, %c0_12, %c0_13] : memref<1x8x128xf32, #tpu.memory_space<vmem>>, vector<1x8x128xf32>
    %66 = vector.shape_cast %65 : vector<1x8x128xf32> to vector<8x128xf32>
    %67 = vector.shape_cast %58 : vector<8x128xf32> to vector<1x8x128xf32>
    %cst_14 = arith.constant dense<0.000000e+00> : vector<8x128xf32>
    %68 = vector.multi_reduction <add>, %67, %cst_14 [0] : vector<1x8x128xf32> to vector<8x128xf32>
    %69 = arith.addf %66, %68 : vector<8x128xf32>
    %c0_15 = arith.constant 0 : index
    %c0_16 = arith.constant 0 : index
    %c0_17 = arith.constant 0 : index
    %70 = vector.load %arg5[%c0_15, %c0_16, %c0_17] : memref<1x8x128xf32, #tpu.memory_space<vmem>>, vector<1x8x128xf32>
    %71 = vector.shape_cast %70 : vector<1x8x128xf32> to vector<8x128xf32>
    %72 = vector.shape_cast %69 : vector<8x128xf32> to vector<1x8x128xf32>
    tpu.vector_store %arg5[%c0_15, %c0_16, %c0_17], %72 {strides = array<i32>} : memref<1x8x128xf32, #tpu.memory_space<vmem>>, vector<1x8x128xf32>,
    %c0_18 = arith.constant 0 : index
    %c0_19 = arith.constant 0 : index
    %c0_20 = arith.constant 0 : index
    %73 = vector.load %arg6[%c0_18, %c0_19, %c0_20] : memref<1x8x128xf32, #tpu.memory_space<vmem>>, vector<1x8x128xf32>
    %74 = vector.shape_cast %73 : vector<1x8x128xf32> to vector<8x128xf32>
    %75 = vector.shape_cast %64 : vector<8x128xf32> to vector<1x8x128xf32>
    %cst_21 = arith.constant dense<0.000000e+00> : vector<8x128xf32>
    %76 = vector.multi_reduction <add>, %75, %cst_21 [0] : vector<1x8x128xf32> to vector<8x128xf32>
    %77 = arith.addf %74, %76 : vector<8x128xf32>
    %c0_22 = arith.constant 0 : index
    %c0_23 = arith.constant 0 : index
    %c0_24 = arith.constant 0 : index
    %78 = vector.load %arg6[%c0_22, %c0_23, %c0_24] : memref<1x8x128xf32, #tpu.memory_space<vmem>>, vector<1x8x128xf32>
    %79 = vector.shape_cast %78 : vector<1x8x128xf32> to vector<8x128xf32>
    %80 = vector.shape_cast %77 : vector<8x128xf32> to vector<1x8x128xf32>
    tpu.vector_store %arg6[%c0_22, %c0_23, %c0_24], %80 {strides = array<i32>} : memref<1x8x128xf32, #tpu.memory_space<vmem>>, vector<1x8x128xf32>,
    return
  }
  func.func @transform_0(%arg0: i32, %arg1: i32) -> i32 {
    %c0_i32 = arith.constant 0 : i32
    %c0_i32_0 = arith.constant 0 : i32
    return %c0_i32 : i32
  }
  func.func @transform_1(%arg0: i32, %arg1: i32) -> (i32, i32) {
    %c1_i32 = arith.constant 1 : i32
    %0 = arith.muli %arg0, %c1_i32 : i32
    %1 = arith.addi %0, %arg1 : i32
    %c0_i32 = arith.constant 0 : i32
    %2 = arith.minsi %1, %c0_i32 : i32
    %c0_i32_0 = arith.constant 0 : i32
    %c0_i32_1 = arith.constant 0 : i32
    return %2, %c0_i32_0 : i32, i32
  }
  func.func @transform_2(%arg0: i32, %arg1: i32) -> (i32, i32) {
    %c1_i32 = arith.constant 1 : i32
    %0 = arith.muli %arg0, %c1_i32 : i32
    %1 = arith.addi %0, %arg1 : i32
    %c0_i32 = arith.constant 0 : i32
    %2 = arith.minsi %1, %c0_i32 : i32
    %c0_i32_0 = arith.constant 0 : i32
    %c0_i32_1 = arith.constant 0 : i32
    return %2, %c0_i32_0 : i32, i32
  }
  func.func @transform_3(%arg0: i32, %arg1: i32) -> (i32, i32, i32) {
    %c0_i32 = arith.constant 0 : i32
    %c0_i32_0 = arith.constant 0 : i32
    %c0_i32_1 = arith.constant 0 : i32
    return %arg0, %c0_i32, %c0_i32_0 : i32, i32, i32
  }
  func.func @transform_4(%arg0: i32, %arg1: i32) -> (i32, i32, i32) {
    %c0_i32 = arith.constant 0 : i32
    %c0_i32_0 = arith.constant 0 : i32
    %c0_i32_1 = arith.constant 0 : i32
    return %arg0, %c0_i32, %c0_i32_0 : i32, i32, i32
  }
}

</mosaic_0001>

<llo_original>
// kernel: tpu_custom_call.1
$region0: #{tpu_custom_call.1}
  #allocation0 [shape = 'u32[]', space=smem, size = 0x4, offset = 0x4, fixed_abs, tag = 'smem constant byte address 0x4 - core index']
  #allocation1 [shape = 'u32[144,128]{1,0:T(1,128)}', space=vmem, size = 0x12000, scoped, tag = 'internal scratch']
  %s0 = inlined_call_operand.hbm [shape: f32[8], index: 0, kind: input, shape index: {}]
  %s1 = inlined_call_operand.hbm [shape: f32[8,128], index: 1, kind: input, shape index: {}]
  %s2 = inlined_call_operand.hbm [shape: s32[8,128], index: 2, kind: input, shape index: {}]
  %s3 = inlined_call_operand.hbm [shape: f32[1,8,128], index: 3, kind: output, shape index: {0}]
  %s4 = inlined_call_operand.hbm [shape: f32[1,8,128], index: 4, kind: output, shape index: {1}]
  %5 = xla_tuple %s3, %s4
  %s6 = sld [smem:[#allocation0]]
  $region46: #{tpu_custom_call.1} parent=0
    _
  %s8 = ssub.s32 1, %s6
  %s9 = scalar_select 0, %s8, %s6
  $region1: #{tpu_custom_call.1} parent=0
    #allocation2 [shape = 'u8[512]{0}', space=smem, size = 0x200, scoped, tag = 'input window, operand 0, single buffered']
    #allocation3 [shape = 's32[1]{0}', space=sflag, size = 0x4, scoped, tag = 'scoped memory for tpu_custom_call.1']
    #allocation4 [shape = 's32[1]{0}', space=sflag, size = 0x4, scoped, tag = 'scoped memory for tpu_custom_call.1']
    #allocation5 [shape = 's32[1]{0}', space=sflag, size = 0x4, scoped, tag = 'scoped memory for tpu_custom_call.1']
    #allocation6 [shape = 'u8[4096]{0}', space=vmem, size = 0x1000, scoped, tag = 'input window, operand 1, single buffered']
    #allocation7 [shape = 'u8[4096]{0}', space=vmem, size = 0x1000, scoped, tag = 'input window, operand 2, single buffered']
    #allocation8 [shape = 's32[1]{0}', space=sflag, size = 0x4, scoped, tag = 'scoped memory for tpu_custom_call.1']
    #allocation9 [shape = 'u8[4096]{0}', space=vmem, size = 0x1000, scoped, tag = 'output window, operand 0, single buffered']
    #allocation10 [shape = 'u8[4096]{0}', space=vmem, size = 0x1000, scoped, tag = 'output window, operand 1, single buffered']
    #allocation11 [shape = 's32[1]{0}', space=sflag, size = 0x4, scoped, tag = 'scoped memory for tpu_custom_call.1']
    %10 = vsyncpa [#allocation5], 0
    %11 = vsyncpa [#allocation3], 0
    %12 = vsyncpa [#allocation8], 0
    %13 = vsyncpa [#allocation4], 0
    %14 = vsyncpa [#allocation11], 0
    // Predicated region
    $region2: #{tpu_custom_call.1} parent=1 // pred_check
      _
    $region3: #{tpu_custom_call.1} parent=1 // pred_check_branch
      %16 = sbr.rel (0) target = $region5
    $region4: #{tpu_custom_call.1} parent=1 // pred_region
      %s18 = ssub.s32 16, 16
      %19 = vsyncadd [#allocation5], %s18
      %22 = dma.hbm_to_smem %s0, 16, [#allocation2], [#allocation5]
    $region5: #{tpu_custom_call.1} parent=1 // pred_fallthru
      _
    // Predicated region
    $region6: #{tpu_custom_call.1} parent=1 // pred_check
      _
    $region7: #{tpu_custom_call.1} parent=1 // pred_check_branch
      %24 = sbr.rel (0) target = $region9
    $region8: #{tpu_custom_call.1} parent=1 // pred_region
      %s25 = sadd.s32 0, 0
      %p26 = scmp.lt.s32.totalorder %s25, 0
      %s27 = scalar_select %p26, %s25, 0
      %s29 = ssub.s32 128, 128
      %30 = vsyncadd [#allocation3], %s29
      %s31 = smul.addr %s27, 128
      %s32 = scalar_lea.hbm %s1, %s31
      %s34 = sshll.u32 [#allocation6], 4
      %s35 = int_to_ptr.vmem [resolvable:$true] %s34
      %37 = dma.hbm_to_vmem [thread:$0]  %s32, 128, %s35, [#allocation3]
    $region9: #{tpu_custom_call.1} parent=1 // pred_fallthru
      _
    // Predicated region
    $region10: #{tpu_custom_call.1} parent=1 // pred_check
      _
    $region11: #{tpu_custom_call.1} parent=1 // pred_check_branch
      %39 = sbr.rel (0) target = $region13
    $region12: #{tpu_custom_call.1} parent=1 // pred_region
      %s40 = sadd.s32 0, 0
      %p41 = scmp.lt.s32.totalorder %s40, 0
      %s42 = scalar_select %p41, %s40, 0
      %s44 = ssub.s32 128, 128
      %45 = vsyncadd [#allocation8], %s44
      %s46 = smul.addr %s42, 128
      %s47 = scalar_lea.hbm %s2, %s46
      %s49 = sshll.u32 [#allocation7], 4
      %s50 = int_to_ptr.vmem [resolvable:$true] %s49
      %52 = dma.hbm_to_vmem [thread:$0]  %s47, 128, %s50, [#allocation8]
    $region13: #{tpu_custom_call.1} parent=1 // pred_fallthru
      _
    // Predicated region
    $region14: #{tpu_custom_call.1} parent=1 // pred_check
      _
    $region15: #{tpu_custom_call.1} parent=1 // pred_check_branch
      %54 = sbr.rel (0) target = $region17
    $region16: #{tpu_custom_call.1} parent=1 // pred_region
      %55 = dma.done [#allocation5], 16
    $region17: #{tpu_custom_call.1} parent=1 // pred_fallthru
      _
    // Predicated region
    $region18: #{tpu_custom_call.1} parent=1 // pred_check
      _
    $region19: #{tpu_custom_call.1} parent=1 // pred_check_branch
      %57 = sbr.rel (0) target = $region21
    $region20: #{tpu_custom_call.1} parent=1 // pred_region
      %58 = dma.done [#allocation3], 128
    $region21: #{tpu_custom_call.1} parent=1 // pred_fallthru
      _
    // Predicated region
    $region22: #{tpu_custom_call.1} parent=1 // pred_check
      _
    $region23: #{tpu_custom_call.1} parent=1 // pred_check_branch
      %60 = sbr.rel (0) target = $region25
    $region24: #{tpu_custom_call.1} parent=1 // pred_region
      %61 = dma.done [#allocation8], 128
    $region25: #{tpu_custom_call.1} parent=1 // pred_fallthru
      _
    %62 = sfence
    %s63 = sadd.s32 0, 0
    %p64 = scmp.lt.s32.totalorder %s63, 0
    %s65 = scalar_select %p64, %s63, 0
    %s66 = sadd.s32 0, 0
    %p67 = scmp.lt.s32.totalorder %s66, 0
    %s68 = scalar_select %p67, %s66, 0
    %p69 = scmp.eq.s32.totalorder 0, 0
    // Predicated region
    $region26: #{tpu_custom_call.1} parent=1 // pred_check
      %p70 = pneg %p69
    $region27: #{tpu_custom_call.1} parent=1 // pred_check_branch
      %72 = sbr.rel (%p70) target = $region29
    $region28: #{tpu_custom_call.1} parent=1 // pred_region
      %73 = vst [vmem:[#allocation9] sm:$0xff] 0.0
      %74 = vst [vmem:[#allocation10] sm:$0xff] 0.0
    $region29: #{tpu_custom_call.1} parent=1 // pred_fallthru
      _
    %v75 = vld [vmem:[#allocation6] sm:$0xff]
    %v76 = vld [vmem:[#allocation7] sm:$0xff]
    %s77 = sadd.s32 0, 0
    %s78 = smul.u32 %s77, 8
    %s79 = ssub.s32 8, %s78
    %v80 = vlaneseq
    %v81 = vshrl.u32 %v80, 7
    %v82 = vstv %s79
    %vm83 = vcmp.lt.s32.totalorder %v81, %v82
    %vm84 = vcmp.eq.s32.totalorder %v76, 0
    %s85 = sld [smem:[#allocation2]]
    %v86 = vstv %s85
    %v87 = vsel %vm84, %v86, 0.0
    %vm88 = vcmp.eq.s32.totalorder %v76, 1
    %s89 = sld [smem:[#allocation2 + $0x1]]
    %v90 = vstv %s89
    %v91 = vsel %vm88, %v90, %v87
    %vm92 = vcmp.eq.s32.totalorder %v76, 2
    %s93 = sld [smem:[#allocation2 + $0x2]]
    %v94 = vstv %s93
    %v95 = vsel %vm92, %v94, %v91
    %vm96 = vcmp.eq.s32.totalorder %v76, 3
    %s97 = sld [smem:[#allocation2 + $0x3]]
    %v98 = vstv %s97
    %v99 = vsel %vm96, %v98, %v95
    %vm100 = vcmp.eq.s32.totalorder %v76, 4
    %s101 = sld [smem:[#allocation2 + $0x4]]
    %v102 = vstv %s101
    %v103 = vsel %vm100, %v102, %v99
    %vm104 = vcmp.eq.s32.totalorder %v76, 5
    %s105 = sld [smem:[#allocation2 + $0x5]]
    %v106 = vstv %s105
    %v107 = vsel %vm104, %v106, %v103
    %vm108 = vcmp.eq.s32.totalorder %v76, 6
    %s109 = sld [smem:[#allocation2 + $0x6]]
    %v110 = vstv %s109
    %v111 = vsel %vm108, %v110, %v107
    %vm112 = vcmp.eq.s32.totalorder %v76, 7
    %s113 = sld [smem:[#allocation2 + $0x7]]
    %v114 = vstv %s113
    %v115 = vsel %vm112, %v114, %v111
    %v116 = vcvt.s32.f32 %v76
    %v117 = vsub.f32 %v116, %v75
    %v118 = vmul.f32 %v117, %v117
    %v119 = vmul.f32 %v115, %v118
    %v120 = vsel %vm83, %v119, 0.0
    %vm121 = vcmp.ne.s32.totalorder %v76, 4294967196
    %vm122 = vmand %vm121, %vm83
    %v123 = vsel %vm122, 1.0, 0.0
    %v124 = vld [vmem:[#allocation9] sm:$0xff]
    %v125 = vadd.f32 %v120, 0.0
    %v126 = vadd.f32 %v124, %v125
    %127 = vst [vmem:[#allocation9] sm:$0xff] %v126
    %v128 = vld [vmem:[#allocation10] sm:$0xff]
    %v129 = vadd.f32 %v123, 0.0
    %v130 = vadd.f32 %v128, %v129
    %131 = vst [vmem:[#allocation10] sm:$0xff] %v130
    // Predicated region
    $region30: #{tpu_custom_call.1} parent=1 // pred_check
      _
    $region31: #{tpu_custom_call.1} parent=1 // pred_check_branch
      %133 = sbr.rel (0) target = $region33
    $region32: #{tpu_custom_call.1} parent=1 // pred_region
      %s135 = ssub.s32 128, 128
      %136 = vsyncadd [#allocation4], %s135
      %s138 = sshll.u32 [#allocation9], 4
      %s139 = int_to_ptr.vmem [resolvable:$true] %s138
      %141 = dma.vmem_to_hbm [thread:$0]  %s139, 128, %s3, [#allocation4]
    $region33: #{tpu_custom_call.1} parent=1 // pred_fallthru
      _
    // Predicated region
    $region34: #{tpu_custom_call.1} parent=1 // pred_check
      _
    $region35: #{tpu_custom_call.1} parent=1 // pred_check_branch
      %143 = sbr.rel (0) target = $region37
    $region36: #{tpu_custom_call.1} parent=1 // pred_region
      %s145 = ssub.s32 128, 128
      %146 = vsyncadd [#allocation11], %s145
      %s148 = sshll.u32 [#allocation10], 4
      %s149 = int_to_ptr.vmem [resolvable:$true] %s148
      %151 = dma.vmem_to_hbm [thread:$0]  %s149, 128, %s4, [#allocation11]
    $region37: #{tpu_custom_call.1} parent=1 // pred_fallthru
      _
    // Predicated region
    $region38: #{tpu_custom_call.1} parent=1 // pred_check
      _
    $region39: #{tpu_custom_call.1} parent=1 // pred_check_branch
      %153 = sbr.rel (0) target = $region41
    $region40: #{tpu_custom_call.1} parent=1 // pred_region
      %154 = dma.done [#allocation4], 128
    $region41: #{tpu_custom_call.1} parent=1 // pred_fallthru
      _
    // Predicated region
    $region42: #{tpu_custom_call.1} parent=1 // pred_check
      _
    $region43: #{tpu_custom_call.1} parent=1 // pred_check_branch
      %156 = sbr.rel (0) target = $region45
    $region44: #{tpu_custom_call.1} parent=1 // pred_region
      %157 = dma.done [#allocation11], 128
    $region45: #{tpu_custom_call.1} parent=1 // pred_fallthru
      _
    %158 = vsyncpa [#allocation3], 1
    %159 = vsyncpa [#allocation8], 1
    %160 = vsyncpa [#allocation4], 1
    %161 = vsyncpa [#allocation11], 1
    %162 = vsyncpa [#allocation5], 1

</llo_original>
